<compile_context>
chip_gen: v7x
topology: tpu7x:2x2x1
jax: 0.10.0
libtpu: 0.0.40
codegen_flags: <defaults>
</compile_context>

<pallas_src>
import jax
import jax.numpy as jnp
from jax.experimental import pallas as pl
from jax.experimental.pallas import tpu as pltpu

# -------------------- model hyper-parameters (small, synthetic) -------------
VOCAB = 50
EMBED_DIM = 32
N_HEADS = 2
FFN_DIM = 64
N_POS = 16
NEG_INF = -1e20  # ParlAI neginf for float32


# ----------------------------- Pallas kernel --------------------------------
def _ck_attn_kernel(ctx_ref, know_ref, scale_ref, ckm_ref, attn_ref):
    # Per grid step n (one batch element):
    #   ctx_ref   (1, Tc, D)  encoder output, pads already zeroed by encoder
    #   know_ref  (K, Tk, D)  encoder output for this element's K sentences
    #   scale_ref (1, 1, K)   rsqrt(len_k) * rsqrt(len_c) / D   (precomputed)
    #   ckm_ref   (1, 1, K)   1.0 keep / 0.0 -> neginf
    #   attn_ref  (1, 1, K)   output ck_attn row (lane-dense in K)
    ctx_sum = jnp.sum(ctx_ref[...], axis=1)      # (1, D)  sublane reduce
    know_sum = jnp.sum(know_ref[...], axis=1)    # (K, D)  sublane reduce

    # (1, D) x (K, D)^T -> (1, K): K lands on the lane axis of the MXU result,
    # so the epilogue store below is a single lane-dense store.
    raw = jnp.einsum('qd,kd->qk', ctx_sum, know_sum,
                     preferred_element_type=jnp.float32)   # (1, K)

    # Fold both USE normalizations and 1/D into one per-(n,k) multiply.
    # (All-padding rows: raw==0, scale==inf -> NaN, exact ParlAI 0/0 parity;
    #  such rows are normally excluded by ck_mask.)
    attn = raw[:, None, :] * scale_ref[...]                 # (1, 1, K)
    attn_ref[...] = jnp.where(ckm_ref[...] > 0.0, attn, jnp.float32(NEG_INF))


def ck_attention_pallas(ctx_enc, ctx_maskf, know_enc, know_maskf, ck_mask):
    """ctx_enc (N,Tc,D) f32, ctx_maskf (N,Tc) f32, know_enc (N*K,Tk,D) f32,
    know_maskf (N*K,Tk) f32, ck_mask (N,K) bool  ->  ck_attn (N,K) f32.

    NOTE: relies on the encoder zeroing padded positions (x = x * mask); the
    masks are only used here to derive the tiny per-row lengths."""
    N, K = ck_mask.shape
    Tc, D = ctx_enc.shape[1], ctx_enc.shape[2]
    Tk = know_enc.shape[1]

    # Tiny host-side scalars: combined per-(n,k) normalization.
    ctx_len = jnp.sum(ctx_maskf, axis=1)                      # (N,)
    know_len = jnp.sum(know_maskf, axis=1).reshape(N, K)      # (N, K)
    scale = (jax.lax.rsqrt(know_len)
             * jax.lax.rsqrt(ctx_len)[:, None]
             / jnp.float32(D))                                # (N, K)
    scale3 = scale[:, None, :]                                # (N, 1, K)
    ckm3 = ck_mask.astype(jnp.float32)[:, None, :]            # (N, 1, K)

    out = pl.pallas_call(
        _ck_attn_kernel,
        out_shape=jax.ShapeDtypeStruct((N, 1, K), jnp.float32),
        grid=(N,),
        in_specs=[
            pl.BlockSpec((1, Tc, D), lambda n: (n, 0, 0)),    # context
            pl.BlockSpec((K, Tk, D), lambda n: (n, 0, 0)),    # K know rows
            pl.BlockSpec((1, 1, K), lambda n: (n, 0, 0)),     # scale
            pl.BlockSpec((1, 1, K), lambda n: (n, 0, 0)),     # ck mask
        ],
        out_specs=pl.BlockSpec((1, 1, K), lambda n: (n, 0, 0)),
        compiler_params=pltpu.CompilerParams(
            dimension_semantics=("parallel",)),               # v7x megacore
    )(ctx_enc, know_enc, scale3, ckm3)
    return out.reshape(N, K)


# ----------------- deterministic stand-in transformer encoder (glue) --------
def init_params(key):
    ks = jax.random.split(key, 8)
    d = EMBED_DIM

    def w(k, shape):
        return jax.random.normal(k, shape, jnp.float32) * 0.02

    emb = w(ks[0], (VOCAB, d)).at[0].set(0.0)  # padding_idx = 0
    return dict(
        emb=emb,
        pos=w(ks[1], (N_POS, d)),
        wq=w(ks[2], (d, d)), bq=jnp.zeros((d,), jnp.float32),
        wk=w(ks[3], (d, d)), bk=jnp.zeros((d,), jnp.float32),
        wv=w(ks[4], (d, d)), bv=jnp.zeros((d,), jnp.float32),
        wo=w(ks[5], (d, d)), bo=jnp.zeros((d,), jnp.float32),
        w1=w(ks[6], (d, FFN_DIM)), b1=jnp.zeros((FFN_DIM,), jnp.float32),
        w2=w(ks[7], (FFN_DIM, d)), b2=jnp.zeros((d,), jnp.float32),
        ln1_g=jnp.ones((d,), jnp.float32), ln1_b=jnp.zeros((d,), jnp.float32),
        ln2_g=jnp.ones((d,), jnp.float32), ln2_b=jnp.zeros((d,), jnp.float32),
    )


def _layer_norm(x, g, b, eps=1e-5):
    m = jnp.mean(x, axis=-1, keepdims=True)
    v = jnp.var(x, axis=-1, keepdims=True)
    return (x - m) / jnp.sqrt(v + eps) * g + b


def transformer_encode(p, tokens):
    """Single-layer ParlAI-style transformer encoder (plain JAX glue).
    Returns (encoded (B,T,D) f32, mask (B,T) bool, maskf (B,T) f32).
    NOTE: ends with x = x * mask3, i.e. padded positions are zeroed — the
    Pallas kernel's unmasked pooling sums rely on this."""
    B, T = tokens.shape
    D = EMBED_DIM
    H = N_HEADS
    Dh = D // H
    mask = tokens != 0
    maskf = mask.astype(jnp.float32)
    mask3 = maskf[..., None]

    x = p['emb'][tokens] * jnp.sqrt(jnp.float32(D))  # embeddings_scale
    x = x + p['pos'][:T][None]
    x = x * mask3

    q = (x @ p['wq'] + p['bq']).reshape(B, T, H, Dh).transpose(0, 2, 1, 3)
    k = (x @ p['wk'] + p['bk']).reshape(B, T, H, Dh).transpose(0, 2, 1, 3)
    v = (x @ p['wv'] + p['bv']).reshape(B, T, H, Dh).transpose(0, 2, 1, 3)
    scores = jnp.einsum('bhqd,bhkd->bhqk', q, k) / jnp.sqrt(jnp.float32(Dh))
    scores = jnp.where(mask[:, None, None, :], scores, NEG_INF)
    w = jax.nn.softmax(scores, axis=-1)
    a = jnp.einsum('bhqk,bhkd->bhqd', w, v).transpose(0, 2, 1, 3).reshape(B, T, D)
    a = a @ p['wo'] + p['bo']
    x = _layer_norm(x + a, p['ln1_g'], p['ln1_b'])
    f = jax.nn.relu(x @ p['w1'] + p['b1']) @ p['w2'] + p['b2']
    x = _layer_norm(x + f, p['ln2_g'], p['ln2_b'])
    x = x * mask3
    return x, mask, maskf


# ----------------------- ContextKnowledgeEncoder.forward --------------------
def context_knowledge_encoder(params, src_tokens, know_tokens, ck_mask,
                              cs_ids, use_cs_ids):
    N, K, Tk = know_tokens.shape

    context_encoded, context_mask, context_maskf = transformer_encode(
        params, src_tokens)
    know_flat = know_tokens.reshape(-1, Tk)
    know_encoded, know_mask, know_maskf = transformer_encode(params, know_flat)

    # hot path (USE pooling + knowledge/context attention + masking) in Pallas
    ck_attn = ck_attention_pallas(
        context_encoded, context_maskf,
        know_encoded, know_maskf, ck_mask)

    if not use_cs_ids:
        cs_ids = jnp.argmax(ck_attn, axis=1).astype(jnp.int32)

    cs_offsets = jnp.arange(N, dtype=jnp.int32) * K + cs_ids
    cs_encoded = know_encoded[cs_offsets]
    cs_mask = know_mask[cs_offsets]

    full_enc = jnp.concatenate([cs_encoded, context_encoded], axis=1)
    full_mask = jnp.concatenate([cs_mask, context_mask], axis=1)
    return full_enc, full_mask, ck_attn


# ------------------------- pure-JAX reference (check) ------------------------
def _ck_attn_ref(ctx_enc, ctx_maskf, know_enc, know_maskf, ck_mask):
    N, K = ck_mask.shape
    D = ctx_enc.shape[-1]
    ctx_use = (ctx_enc * ctx_maskf[..., None]).sum(1)
    ctx_use = ctx_use / jnp.sqrt(ctx_maskf.sum(1, keepdims=True)) / jnp.sqrt(D)
    know_use = (know_enc * know_maskf[..., None]).sum(1)
    know_use = know_use / jnp.sqrt(know_maskf.sum(1, keepdims=True)) / jnp.sqrt(D)
    attn = jnp.einsum('nkd,nd->nk', know_use.reshape(N, K, D), ctx_use)
    return jnp.where(ck_mask, attn, NEG_INF)


# ---------------------------------- main -------------------------------------
if __name__ == "__main__":
    N, K, Tc, Tk = 2, 3, 8, 8

    key = jax.random.PRNGKey(0)
    kp, k1, k2 = jax.random.split(key, 3)
    params = init_params(kp)

    src_tokens = jax.random.randint(k1, (N, Tc), 1, VOCAB, dtype=jnp.int32)
    src_tokens = src_tokens.at[:, 6:].set(0)          # trailing padding
    know_tokens = jax.random.randint(k2, (N, K, Tk), 1, VOCAB, dtype=jnp.int32)
    know_tokens = know_tokens.at[:, :, 5:].set(0)     # trailing padding
    ck_mask = jnp.ones((N, K), dtype=bool).at[1, 2].set(False)
    cs_ids = jnp.zeros((N,), dtype=jnp.int32)

    full_enc, full_mask, ck_attn = context_knowledge_encoder(
        params, src_tokens, know_tokens, ck_mask, cs_ids, use_cs_ids=False)
    jax.block_until_ready((full_enc, full_mask, ck_attn))

    # correctness check of the fused hot path against a pure-JAX reference
    ctx_enc, _, ctx_maskf = transformer_encode(params, src_tokens)
    know_enc, _, know_maskf = transformer_encode(
        params, know_tokens.reshape(-1, Tk))
    ref_attn = _ck_attn_ref(ctx_enc, ctx_maskf, know_enc, know_maskf, ck_mask)
    assert jnp.allclose(ck_attn, ref_attn, rtol=1e-4, atol=1e-5), \
        "ck_attn mismatch vs reference"

    assert full_enc.shape == (N, Tk + Tc, EMBED_DIM)
    assert full_mask.shape == (N, Tk + Tc)
    assert ck_attn.shape == (N, K)
    print("KERNEL_OK")
</pallas_src>

<mosaic_0001>
module attributes {stable_mosaic.version = 11 : i64} {
  func.func @_ck_attn_kernel(%arg0: i32, %arg1: memref<1x8x32xf32, #tpu.memory_space<vmem>>, %arg2: memref<3x8x32xf32, #tpu.memory_space<vmem>>, %arg3: memref<1x1x3xf32, #tpu.memory_space<vmem>>, %arg4: memref<1x1x3xf32, #tpu.memory_space<vmem>>, %arg5: memref<1x1x3xf32, #tpu.memory_space<vmem>>) attributes {dimension_semantics = [#tpu.dimension_semantics<parallel>], iteration_bounds = array<i64: 2>, scalar_prefetch = 0 : i64, scratch_operands = 0 : i64, tpu.core_type = #tpu.core_type<tc>, window_params = [{transform_indices = @transform_0, window_bounds = array<i64: 1, 8, 32>}, {transform_indices = @transform_1, window_bounds = array<i64: 3, 8, 32>}, {transform_indices = @transform_2, window_bounds = array<i64: 1, 1, 3>}, {transform_indices = @transform_3, window_bounds = array<i64: 1, 1, 3>}, {transform_indices = @transform_4, window_bounds = array<i64: 1, 1, 3>}]} {
    %c0 = arith.constant 0 : index
    %c0_0 = arith.constant 0 : index
    %c0_1 = arith.constant 0 : index
    %0 = vector.load %arg1[%c0, %c0_0, %c0_1] : memref<1x8x32xf32, #tpu.memory_space<vmem>>, vector<1x8x32xf32>
    %cst = arith.constant dense<0.000000e+00> : vector<1x32xf32>
    %1 = vector.multi_reduction <add>, %0, %cst [1] : vector<1x8x32xf32> to vector<1x32xf32>
    %c0_2 = arith.constant 0 : index
    %c0_3 = arith.constant 0 : index
    %c0_4 = arith.constant 0 : index
    %2 = vector.load %arg2[%c0_2, %c0_3, %c0_4] : memref<3x8x32xf32, #tpu.memory_space<vmem>>, vector<3x8x32xf32>
    %cst_5 = arith.constant dense<0.000000e+00> : vector<3x32xf32>
    %3 = vector.multi_reduction <add>, %2, %cst_5 [1] : vector<3x8x32xf32> to vector<3x32xf32>
    "tpu.trace_start"() <{level = 10 : i32, message = "qd,kd->qk"}> : () -> ()
    %cst_6 = arith.constant dense<0.000000e+00> : vector<1x3xf32>
    %4 = tpu.matmul %1, %3, %cst_6 {dimension_numbers = #tpu.dot_dimension_numbers<[1], [1], [0], [0], [0, 0, 1, 0], [], []>} : vector<1x32xf32>, vector<3x32xf32>, vector<1x3xf32> -> vector<1x3xf32>
    "tpu.trace_stop"() : () -> ()
    %5 = vector.shape_cast %4 : vector<1x3xf32> to vector<1x1x3xf32>
    %c0_7 = arith.constant 0 : index
    %c0_8 = arith.constant 0 : index
    %c0_9 = arith.constant 0 : index
    %6 = vector.load %arg3[%c0_7, %c0_8, %c0_9] : memref<1x1x3xf32, #tpu.memory_space<vmem>>, vector<1x1x3xf32>
    %7 = arith.mulf %5, %6 : vector<1x1x3xf32>
    %c0_10 = arith.constant 0 : index
    %c0_11 = arith.constant 0 : index
    %c0_12 = arith.constant 0 : index
    %8 = vector.load %arg4[%c0_10, %c0_11, %c0_12] : memref<1x1x3xf32, #tpu.memory_space<vmem>>, vector<1x1x3xf32>
    %cst_13 = arith.constant 0.000000e+00 : f32
    %9 = vector.broadcast %cst_13 : f32 to vector<1x1x3xf32>
    %10 = arith.cmpf ogt, %8, %9 : vector<1x1x3xf32>
    %cst_14 = arith.constant -1.000000e+20 : f32
    %11 = vector.broadcast %cst_14 : f32 to vector<1x1x3xf32>
    %12 = arith.select %10, %7, %11 : vector<1x1x3xi1>, vector<1x1x3xf32>
    %c0_15 = arith.constant 0 : index
    %c0_16 = arith.constant 0 : index
    %c0_17 = arith.constant 0 : index
    %13 = vector.load %arg5[%c0_15, %c0_16, %c0_17] : memref<1x1x3xf32, #tpu.memory_space<vmem>>, vector<1x1x3xf32>
    tpu.vector_store %arg5[%c0_15, %c0_16, %c0_17], %12 {strides = array<i32>} : memref<1x1x3xf32, #tpu.memory_space<vmem>>, vector<1x1x3xf32>,
    return
  }
  func.func @transform_0(%arg0: i32) -> (i32, i32, i32) {
    %c0_i32 = arith.constant 0 : i32
    %c0_i32_0 = arith.constant 0 : i32
    %c0_i32_1 = arith.constant 0 : i32
    return %arg0, %c0_i32, %c0_i32_0 : i32, i32, i32
  }
  func.func @transform_1(%arg0: i32) -> (i32, i32, i32) {
    %c0_i32 = arith.constant 0 : i32
    %c0_i32_0 = arith.constant 0 : i32
    %c0_i32_1 = arith.constant 0 : i32
    return %arg0, %c0_i32, %c0_i32_0 : i32, i32, i32
  }
  func.func @transform_2(%arg0: i32) -> (i32, i32, i32) {
    %c0_i32 = arith.constant 0 : i32
    %c0_i32_0 = arith.constant 0 : i32
    %c0_i32_1 = arith.constant 0 : i32
    return %arg0, %c0_i32, %c0_i32_0 : i32, i32, i32
  }
  func.func @transform_3(%arg0: i32) -> (i32, i32, i32) {
    %c0_i32 = arith.constant 0 : i32
    %c0_i32_0 = arith.constant 0 : i32
    %c0_i32_1 = arith.constant 0 : i32
    return %arg0, %c0_i32, %c0_i32_0 : i32, i32, i32
  }
  func.func @transform_4(%arg0: i32) -> (i32, i32, i32) {
    %c0_i32 = arith.constant 0 : i32
    %c0_i32_0 = arith.constant 0 : i32
    %c0_i32_1 = arith.constant 0 : i32
    return %arg0, %c0_i32, %c0_i32_0 : i32, i32, i32
  }
}

</mosaic_0001>

<llo_original>
// kernel: tpu_custom_call.1
$region0: #{tpu_custom_call.1}
  #allocation0 [shape = 'u32[]', space=smem, size = 0x4, offset = 0x4, fixed_abs, tag = 'smem constant byte address 0x4 - core index']
  #allocation1 [shape = 'u32[144,128]{1,0:T(1,128)}', space=vmem, size = 0x12000, scoped, tag = 'internal scratch']
  %s0 = inlined_call_operand.hbm [shape: f32[2,8,32], index: 0, kind: input, shape index: {}]
  %s1 = inlined_call_operand.hbm [shape: f32[6,8,32], index: 1, kind: input, shape index: {}]
  %s2 = inlined_call_operand.vmem [shape: f32[2,1,3], index: 2, kind: input, shape index: {}]
  %s3 = inlined_call_operand.vmem [shape: f32[2,1,3], index: 3, kind: input, shape index: {}]
  %s4 = inlined_call_operand.hbm [shape: f32[2,1,3], index: 4, kind: output, shape index: {}]
  %s5 = sld [smem:[#allocation0]]
  $region57: #{tpu_custom_call.1} parent=0
    _
  %s7 = ssub.s32 1, %s5
  %s8 = scalar_select 0, %s7, %s5
  $region1: #{tpu_custom_call.1} parent=0
    #allocation2 [shape = 'u8[8192]{0}', space=vmem, size = 0x2000, scoped, tag = 'input window, operand 0']
    #allocation3 [shape = 's32[2]{0}', space=sflag, size = 0x8, scoped, tag = 'scoped memory for tpu_custom_call.1']
    #allocation4 [shape = 's32[2]{0}', space=sflag, size = 0x8, scoped, tag = 'scoped memory for tpu_custom_call.1']
    #allocation5 [shape = 'u8[24576]{0}', space=vmem, size = 0x6000, scoped, tag = 'input window, operand 1']
    #allocation6 [shape = 's32[2]{0}', space=sflag, size = 0x8, scoped, tag = 'scoped memory for tpu_custom_call.1']
    #allocation7 [shape = 'u8[1024]{0}', space=vmem, size = 0x400, scoped, tag = 'output window, operand 0']
    %9 = vsyncpa [#allocation3], 0
    %s10 = scalar_lea.sflag [#allocation3], 1
    %11 = vsyncpa %s10, 0
    %12 = vsyncpa [#allocation6], 0
    %s13 = scalar_lea.sflag [#allocation6], 1
    %14 = vsyncpa %s13, 0
    %15 = vsyncpa [#allocation4], 0
    %s16 = scalar_lea.sflag [#allocation4], 1
    %17 = vsyncpa %s16, 0
    loop: start=0, step=1, limit=4
    $region2: #{tpu_custom_call.1} parent=1 // loop_pre_header
      _
    $region3: #{tpu_custom_call.1} parent=1 // loop_header
      %s19 = sphi 0, %s23
      %p20 = scmp.ge.s32.totalorder %s19, 4
      %s29 = sphi 0, %s31
      %s32 = sphi 0, %s29
      %s33 = sphi 0, %s32
      %s49 = sphi 0, %s33
      %s55 = sphi 0, %s57
      %s58 = sphi 0, %s55
      %s59 = sphi 0, %s58
      %s75 = sphi 0, %s59
      %s81 = sphi 0, %s83
      %s84 = sphi 0, %s81
      %s85 = sphi 0, %s84
      %s101 = sphi 0, %s85
      %s107 = sphi 0, %s109
      %s110 = sphi 0, %s107
      %s111 = sphi 0, %s110
      %s127 = sphi 0, %s111
      %s133 = sphi 0, %s135
      %s136 = sphi 0, %s133
      %s137 = sphi 0, %s136
      %s153 = sphi 0, %s137
    $region4: #{tpu_custom_call.1} parent=1 // loop_header_branch
      %22 = sbr.rel (%p20) target = $region8
    $region5: #{tpu_custom_call.1} parent=1 // loop_body
      %s24 = ssub.s32 %s19, 1
      %s25 = ssub.s32 %s19, 2
      %s26 = sadd.s32 %s19, 1
      %s27 = ssub.s32 %s19, %s26
      %p28 = scmp.eq.s32.totalorder %s27, 0
      %s30 = sadd.s32 %s29, 1
      %s31 = scalar_select %p28, %s29, %s30
      %p34 = pneg %p28
      %p35 = scmp.eq.s32.totalorder %s19, 1
      %p36 = por %p34, %p35
      %p37 = scmp.ne.s32.totalorder %s29, %s32
      %p38 = scmp.eq.s32.totalorder %s19, 0
      %p39 = por %p37, %p38
      %p40 = scmp.ne.s32.totalorder %s29, %s32
      %p41 = scmp.eq.s32.totalorder %s24, 1
      %p42 = por %p40, %p41
      %p43 = scmp.ne.s32.totalorder %s32, %s33
      %p44 = scmp.eq.s32.totalorder %s24, 0
      %p45 = por %p43, %p44
      %p46 = scmp.ne.s32.totalorder %s32, %s33
      %p47 = scmp.eq.s32.totalorder %s25, 1
      %p48 = por %p46, %p47
      %p50 = scmp.ne.s32.totalorder %s33, %s49
      %p51 = scmp.eq.s32.totalorder %s25, 0
      %p52 = por %p50, %p51
      %s53 = ssub.s32 %s19, %s26
      %p54 = scmp.eq.s32.totalorder %s53, 0
      %s56 = sadd.s32 %s55, 1
      %s57 = scalar_select %p54, %s55, %s56
      %p60 = pneg %p54
      %p61 = scmp.eq.s32.totalorder %s19, 1
      %p62 = por %p60, %p61
      %p63 = scmp.ne.s32.totalorder %s55, %s58
      %p64 = scmp.eq.s32.totalorder %s19, 0
      %p65 = por %p63, %p64
      %p66 = scmp.ne.s32.totalorder %s55, %s58
      %p67 = scmp.eq.s32.totalorder %s24, 1
      %p68 = por %p66, %p67
      %p69 = scmp.ne.s32.totalorder %s58, %s59
      %p70 = scmp.eq.s32.totalorder %s24, 0
      %p71 = por %p69, %p70
      %p72 = scmp.ne.s32.totalorder %s58, %s59
      %p73 = scmp.eq.s32.totalorder %s25, 1
      %p74 = por %p72, %p73
      %p76 = scmp.ne.s32.totalorder %s59, %s75
      %p77 = scmp.eq.s32.totalorder %s25, 0
      %p78 = por %p76, %p77
      %s79 = ssub.s32 %s19, %s26
      %p80 = scmp.eq.s32.totalorder %s79, 0
      %s82 = sadd.s32 %s81, 1
      %s83 = scalar_select %p80, %s81, %s82
      %p86 = pneg %p80
      %p87 = scmp.eq.s32.totalorder %s19, 1
      %p88 = por %p86, %p87
      %p89 = scmp.ne.s32.totalorder %s81, %s84
      %p90 = scmp.eq.s32.totalorder %s19, 0
      %p91 = por %p89, %p90
      %p92 = scmp.ne.s32.totalorder %s81, %s84
      %p93 = scmp.eq.s32.totalorder %s24, 1
      %p94 = por %p92, %p93
      %p95 = scmp.ne.s32.totalorder %s84, %s85
      %p96 = scmp.eq.s32.totalorder %s24, 0
      %p97 = por %p95, %p96
      %p98 = scmp.ne.s32.totalorder %s84, %s85
      %p99 = scmp.eq.s32.totalorder %s25, 1
      %p100 = por %p98, %p99
      %p102 = scmp.ne.s32.totalorder %s85, %s101
      %p103 = scmp.eq.s32.totalorder %s25, 0
      %p104 = por %p102, %p103
      %s105 = ssub.s32 %s19, %s26
      %p106 = scmp.eq.s32.totalorder %s105, 0
      %s108 = sadd.s32 %s107, 1
      %s109 = scalar_select %p106, %s107, %s108
      %p112 = pneg %p106
      %p113 = scmp.eq.s32.totalorder %s19, 1
      %p114 = por %p112, %p113
      %p115 = scmp.ne.s32.totalorder %s107, %s110
      %p116 = scmp.eq.s32.totalorder %s19, 0
      %p117 = por %p115, %p116
      %p118 = scmp.ne.s32.totalorder %s107, %s110
      %p119 = scmp.eq.s32.totalorder %s24, 1
      %p120 = por %p118, %p119
      %p121 = scmp.ne.s32.totalorder %s110, %s111
      %p122 = scmp.eq.s32.totalorder %s24, 0
      %p123 = por %p121, %p122
      %p124 = scmp.ne.s32.totalorder %s110, %s111
      %p125 = scmp.eq.s32.totalorder %s25, 1
      %p126 = por %p124, %p125
      %p128 = scmp.ne.s32.totalorder %s111, %s127
      %p129 = scmp.eq.s32.totalorder %s25, 0
      %p130 = por %p128, %p129
      %s131 = ssub.s32 %s19, %s26
      %p132 = scmp.eq.s32.totalorder %s131, 0
      %s134 = sadd.s32 %s133, 1
      %s135 = scalar_select %p132, %s133, %s134
      %p138 = pneg %p132
      %p139 = scmp.eq.s32.totalorder %s19, 1
      %p140 = por %p138, %p139
      %p141 = scmp.ne.s32.totalorder %s133, %s136
      %p142 = scmp.eq.s32.totalorder %s19, 0
      %p143 = por %p141, %p142
      %p144 = scmp.ne.s32.totalorder %s133, %s136
      %p145 = scmp.eq.s32.totalorder %s24, 1
      %p146 = por %p144, %p145
      %p147 = scmp.ne.s32.totalorder %s136, %s137
      %p148 = scmp.eq.s32.totalorder %s24, 0
      %p149 = por %p147, %p148
      %p150 = scmp.ne.s32.totalorder %s136, %s137
      %p151 = scmp.eq.s32.totalorder %s25, 1
      %p152 = por %p150, %p151
      %p154 = scmp.ne.s32.totalorder %s137, %s153
      %p155 = scmp.eq.s32.totalorder %s25, 0
      %p156 = por %p154, %p155
      %p157 = scmp.le.s32.totalorder 1, %s19
      %p158 = scmp.lt.s32.totalorder %s19, 3
      %p159 = pnand %p157, %p158
      %p160 = pneg %p159
      // Predicated region
      $region9: #{tpu_custom_call.1} parent=5 // pred_check
        _
      $region10: #{tpu_custom_call.1} parent=5 // pred_check_branch
        %162 = sbr.rel (%p159) target = $region12
      $region11: #{tpu_custom_call.1} parent=5 // pred_region
        %s163 = ssub.s32 %s19, 1
      $region12: #{tpu_custom_call.1} parent=5 // pred_fallthru
        _
      %p164 = scmp.lt.s32.totalorder %s19, 2
      // Predicated region
      $region13: #{tpu_custom_call.1} parent=5 // pred_check
        %p165 = pneg %p164
      $region14: #{tpu_custom_call.1} parent=5 // pred_check_branch
        %167 = sbr.rel (%p165) target = $region16
      $region15: #{tpu_custom_call.1} parent=5 // pred_region
        // Predicated region
        $region17: #{tpu_custom_call.1} parent=15 // pred_check
          %p168 = pneg %p39
        $region18: #{tpu_custom_call.1} parent=15 // pred_check_branch
          %170 = sbr.rel (%p168) target = $region20
        $region19: #{tpu_custom_call.1} parent=15 // pred_region
          %s171 = sand.u32 %s29, 1
          %s172 = scalar_lea.sflag [#allocation3], %s171
          %s173 = sand.u32 %s29, 1
          %s174 = smul.addr %s173, 8
          %s175 = scalar_lea.vmem [#allocation2], %s174
          %s177 = ssub.s32 128, 128
          %178 = vsyncadd %s172, %s177
          %s179 = smul.addr %s19, 128
          %s180 = scalar_lea.hbm %s0, %s179
          %s182 = sshll.u32 %s175, 4
          %s183 = int_to_ptr.vmem [resolvable:$true] %s182
          %185 = dma.hbm_to_vmem [thread:$0]  %s180, 128, %s183, %s172
        $region20: #{tpu_custom_call.1} parent=15 // pred_fallthru
          _
        // Predicated region
        $region21: #{tpu_custom_call.1} parent=15 // pred_check
          %p186 = pneg %p65
        $region22: #{tpu_custom_call.1} parent=15 // pred_check_branch
          %188 = sbr.rel (%p186) target = $region24
        $region23: #{tpu_custom_call.1} parent=15 // pred_region
          %s189 = sand.u32 %s55, 1
          %s190 = scalar_lea.sflag [#allocation6], %s189
          %s191 = sand.u32 %s55, 1
          %s192 = smul.addr %s191, 24
          %s193 = scalar_lea.vmem [#allocation5], %s192
          %s194 = smul.u32 3, %s19
          %s196 = ssub.s32 384, 384
          %197 = vsyncadd %s190, %s196
          %s198 = smul.addr %s194, 128
          %s199 = scalar_lea.hbm %s1, %s198
          %s200 = sshll.u32 %s193, 4
          %s201 = int_to_ptr.vmem [resolvable:$true] %s200
          %206 = dma.hbm_to_vmem [thread:$0]  %s199, 384, %s201, %s190, 128, 128, 8
        $region24: #{tpu_custom_call.1} parent=15 // pred_fallthru
          _
        // Predicated region
        $region25: #{tpu_custom_call.1} parent=15 // pred_check
          %p207 = pneg %p91
        $region26: #{tpu_custom_call.1} parent=15 // pred_check_branch
          %209 = sbr.rel (%p207) target = $region28
        $region27: #{tpu_custom_call.1} parent=15 // pred_region
          %p210 = scmp.lt.s32.totalorder %s19, 1
          %s211 = scalar_select %p210, %s19, 1
          %s212 = scalar_lea.vmem %s2, %s211
        $region28: #{tpu_custom_call.1} parent=15 // pred_fallthru
          _
        // Predicated region
        $region29: #{tpu_custom_call.1} parent=15 // pred_check
          %p213 = pneg %p117
        $region30: #{tpu_custom_call.1} parent=15 // pred_check_branch
          %215 = sbr.rel (%p213) target = $region32
        $region31: #{tpu_custom_call.1} parent=15 // pred_region
          %p216 = scmp.lt.s32.totalorder %s19, 1
          %s217 = scalar_select %p216, %s19, 1
          %s218 = scalar_lea.vmem %s3, %s217
        $region32: #{tpu_custom_call.1} parent=15 // pred_fallthru
          _
      $region16: #{tpu_custom_call.1} parent=5 // pred_fallthru
        _
      %p219 = scmp.le.s32.totalorder 1, %s19
      %p220 = scmp.lt.s32.totalorder %s19, 3
      %p221 = pnand %p219, %p220
      %p222 = pneg %p221
      // Predicated region
      $region33: #{tpu_custom_call.1} parent=5 // pred_check
        _
      $region34: #{tpu_custom_call.1} parent=5 // pred_check_branch
        %224 = sbr.rel (%p221) target = $region36
      $region35: #{tpu_custom_call.1} parent=5 // pred_region
        %s225 = ssub.s32 %s19, 1
        %s226 = sand.u32 %s32, 1
        %s227 = scalar_lea.sflag [#allocation3], %s226
        %s228 = sand.u32 %s32, 1
        %s229 = smul.addr %s228, 8
        %s230 = scalar_lea.vmem [#allocation2], %s229
        // Predicated region
        $region37: #{tpu_custom_call.1} parent=35 // pred_check
          %p231 = pneg %p45
        $region38: #{tpu_custom_call.1} parent=35 // pred_check_branch
          %233 = sbr.rel (%p231) target = $region40
        $region39: #{tpu_custom_call.1} parent=35 // pred_region
          %234 = dma.done %s227, 128
        $region40: #{tpu_custom_call.1} parent=35 // pred_fallthru
          _
        %s235 = sand.u32 %s58, 1
        %s236 = scalar_lea.sflag [#allocation6], %s235
        %s237 = sand.u32 %s58, 1
        %s238 = smul.addr %s237, 24
        %s239 = scalar_lea.vmem [#allocation5], %s238
        // Predicated region
        $region41: #{tpu_custom_call.1} parent=35 // pred_check
          %p240 = pneg %p71
        $region42: #{tpu_custom_call.1} parent=35 // pred_check_branch
          %242 = sbr.rel (%p240) target = $region44
        $region43: #{tpu_custom_call.1} parent=35 // pred_region
          %243 = dma.done %s236, 384
        $region44: #{tpu_custom_call.1} parent=35 // pred_fallthru
          _
        %s244 = sand.u32 %s32, 1
        %s245 = scalar_lea.sflag [#allocation3], %s244
        %s246 = sand.u32 %s32, 1
        %s247 = smul.addr %s246, 8
        %s248 = scalar_lea.vmem [#allocation2], %s247
        %p249 = pneg %p45
        %p250 = pneg %p42
        %s251 = sand.u32 %s58, 1
        %s252 = scalar_lea.sflag [#allocation6], %s251
        %s253 = sand.u32 %s58, 1
        %s254 = smul.addr %s253, 24
        %s255 = scalar_lea.vmem [#allocation5], %s254
        %p256 = pneg %p71
        %p257 = pneg %p68
        %p258 = scmp.lt.s32.totalorder %s24, 1
        %s259 = scalar_select %p258, %s24, 1
        %s260 = scalar_lea.vmem %s2, %s259
        %p261 = pneg %p97
        %p262 = pneg %p94
        %p263 = scmp.lt.s32.totalorder %s24, 1
        %s264 = scalar_select %p263, %s24, 1
        %s265 = scalar_lea.vmem %s3, %s264
        %p266 = pneg %p123
        %p267 = pneg %p120
        %p268 = pneg %p149
        %p269 = pneg %p146
        %s270 = sand.u32 %s136, 1
        %s271 = scalar_lea.sflag [#allocation4], %s270
        %s272 = sand.u32 %s136, 1
        %s273 = scalar_lea.vmem [#allocation7], %s272
        %s274 = smul.u32 3, %s24
        %p275 = scmp.lt.s32.totalorder %s24, 1
        %s276 = scalar_select %p275, %s24, 1
        %s277 = scalar_lea.vmem %s2, %s276
        %p278 = scmp.lt.s32.totalorder %s24, 1
        %s279 = scalar_select %p278, %s24, 1
        %s280 = scalar_lea.vmem %s3, %s279
        %v281 = vld [vmem:[%s230] sm:$0xff]
        %vm282 = vcmask 261120
        %v283 = vsel %vm282, %v281, 0.0
        %v284 = vrot.slane %v283, 4
        %v285 = vadd.f32 %v283, %v284
        %v286 = vrot.slane %v285, 2
        %v287 = vadd.f32 %v285, %v286
        %v288 = vrot.slane %v287, 1
        %v289 = vadd.f32 %v287, %v288
        %v290 = vld [vmem:[%s239] sm:$0xff]
        %v291 = vld [vmem:[%s239 + $0x8] sm:$0xff]
        %v292 = vld [vmem:[%s239 + $0x10] sm:$0xff]
        %v293 = vsel %vm282, %v290, 0.0
        %v294 = vrot.slane %v293, 4
        %v295 = vadd.f32 %v293, %v294
        %v296 = vrot.slane %v295, 2
        %v297 = vadd.f32 %v295, %v296
        %v298 = vrot.slane %v297, 1
        %v299 = vadd.f32 %v297, %v298
        %v300 = vsel %vm282, %v291, 0.0
        %v301 = vrot.slane %v300, 4
        %v302 = vadd.f32 %v300, %v301
        %v303 = vrot.slane %v302, 2
        %v304 = vadd.f32 %v302, %v303
        %v305 = vrot.slane %v304, 1
        %v306 = vadd.f32 %v304, %v305
        %v307 = vsel %vm282, %v292, 0.0
        %v308 = vrot.slane %v307, 4
        %v309 = vadd.f32 %v307, %v308
        %v310 = vrot.slane %v309, 2
        %v311 = vadd.f32 %v309, %v310
        %v312 = vrot.slane %v311, 1
        %v313 = vadd.f32 %v311, %v312
        %vm317 = vcmask 1041409
        %v318 = vsel %vm317, %v306, %v299
        %vm319 = vcmask 1042434
        %v320 = vsel %vm319, %v313, %v318
        %v322 = vsel %vm282, %v289, 0
        %v324 = vsel %vm282, %v320, 0
        %326 = vmatprep.subr.mxu0 0.0
        %327 = vmatpush1.xpose.msra.mxu0 %v324
        %328 = vmatprep.subr.mxu0 0.0
        %329 = vmatpush1.xpose.msra.mxu0 0.0
        %330 = vmatprep.subr.mxu0 0.0
        %331 = vmatpush1.xpose.msra.mxu0 0.0
        %332 = vmatprep.subr.mxu0 0.0
        %333 = vmatpush1.xpose.msra.mxu0 0.0
        %334 = vmatprep.subr.mxu0 0.0
        %335 = vmatpush1.xpose.msra.mxu0 0.0
        %336 = vmatprep.subr.mxu0 0.0
        %337 = vmatpush1.xpose.msra.mxu0 0.0
        %338 = vmatprep.subr.mxu0 0.0
        %339 = vmatpush1.xpose.msra.mxu0 0.0
        %340 = vmatprep.subr.mxu0 0.0
        %341 = vmatpush1.xpose.msra.mxu0 0.0
        %342 = vmatprep.subr.mxu0 0.0
        %343 = vmatpush1.xpose.msra.mxu0 0.0
        %344 = vmatprep.subr.mxu0 0.0
        %345 = vmatpush1.xpose.msra.mxu0 0.0
        %346 = vmatprep.subr.mxu0 0.0
        %347 = vmatpush1.xpose.msra.mxu0 0.0
        %348 = vmatprep.subr.mxu0 0.0
        %349 = vmatpush1.xpose.msra.mxu0 0.0
        %350 = vmatprep.subr.mxu0 0.0
        %351 = vmatpush1.xpose.msra.mxu0 0.0
        %352 = vmatprep.subr.mxu0 0.0
        %353 = vmatpush1.xpose.msra.mxu0 0.0
        %354 = vmatprep.subr.mxu0 0.0
        %355 = vmatpush1.xpose.msra.mxu0 0.0
        %356 = vmatprep.subr.mxu0 0.0
        %357 = vmatpush1.xpose.msra.mxu0 0.0
        %358 = vmatprep.subr.mxu0 0.0
        %359 = vmatpush1.xpose.msra.mxu0 0.0
        %360 = vmatprep.subr.mxu0 0.0
        %361 = vmatpush1.xpose.msra.mxu0 0.0
        %362 = vmatprep.subr.mxu0 0.0
        %363 = vmatpush1.xpose.msra.mxu0 0.0
        %364 = vmatprep.subr.mxu0 0.0
        %365 = vmatpush1.xpose.msra.mxu0 0.0
        %366 = vmatprep.subr.mxu0 0.0
        %367 = vmatpush1.xpose.msra.mxu0 0.0
        %368 = vmatprep.subr.mxu0 0.0
        %369 = vmatpush1.xpose.msra.mxu0 0.0
        %370 = vmatprep.subr.mxu0 0.0
        %371 = vmatpush1.xpose.msra.mxu0 0.0
        %372 = vmatprep.subr.mxu0 0.0
        %373 = vmatpush1.xpose.msra.mxu0 0.0
        %374 = vmatprep.subr.mxu0 0.0
        %375 = vmatpush1.xpose.msra.mxu0 0.0
        %376 = vmatprep.subr.mxu0 0.0
        %377 = vmatpush1.xpose.msra.mxu0 0.0
        %378 = vmatprep.subr.mxu0 0.0
        %379 = vmatpush1.xpose.msra.mxu0 0.0
        %380 = vmatprep.subr.mxu0 0.0
        %381 = vmatpush1.xpose.msra.mxu0 0.0
        %382 = vmatprep.subr.mxu0 0.0
        %383 = vmatpush1.xpose.msra.mxu0 0.0
        %384 = vmatprep.subr.mxu0 0.0
        %385 = vmatpush1.xpose.msra.mxu0 0.0
        %386 = vmatprep.subr.mxu0 0.0
        %387 = vmatpush1.xpose.msra.mxu0 0.0
        %388 = vmatprep.subr.mxu0 0.0
        %389 = vmatpush1.xpose.msra.mxu0 0.0
        %390 = vmatprep.mubr.f32.mxu0 0.0
        %391 = vmatmul.mubr.f32.gmra.mrb[0].mxu0 %v322
        %v392 = vpop.f32.mrb[0].mxu0
        %v393 = vadd.f32 0.0, %v392
        %v394 = vpop.f32.mrb[0].mxu0
        %395 = vdwg.mxu0
        %v396 = vld [vmem:[%s277] sm:$0x1]
        %v397 = vmul.f32 %v393, %v396
        %v398 = vld [vmem:[%s280] sm:$0x1]
        %vm399 = vcmp.gt.f32.partialorder %v398, 0.0
        %v400 = vsel %vm399, %v397, -1e+20
        %vm401 = vcmask 16384
        %402 = vst.msk [vmem:[%s273] sm:$0x1] %vm401, %v400
        %s403 = sand.u32 %s136, 1
        %s404 = scalar_lea.sflag [#allocation4], %s403
        %s405 = sand.u32 %s136, 1
        %s406 = scalar_lea.vmem [#allocation7], %s405
        // Predicated region
        $region45: #{tpu_custom_call.1} parent=35 // pred_check
          %p407 = pneg %p146
        $region46: #{tpu_custom_call.1} parent=35 // pred_check_branch
          %409 = sbr.rel (%p407) target = $region48
        $region47: #{tpu_custom_call.1} parent=35 // pred_region
          %s411 = ssub.s32 16, 16
          %412 = vsyncadd %s404, %s411
          %s413 = smul.addr %s24, 16
          %s414 = scalar_lea.hbm %s4, %s413
          %s416 = sshll.u32 %s406, 4
          %s417 = int_to_ptr.vmem [resolvable:$true] %s416
          %419 = dma.vmem_to_hbm [thread:$0]  %s417, 16, %s414, %s404
        $region48: #{tpu_custom_call.1} parent=35 // pred_fallthru
          _
      $region36: #{tpu_custom_call.1} parent=5 // pred_fallthru
        _
      %p420 = scmp.le.s32.totalorder 2, %s19
      // Predicated region
      $region49: #{tpu_custom_call.1} parent=5 // pred_check
        %p421 = pneg %p420
      $region50: #{tpu_custom_call.1} parent=5 // pred_check_branch
        %423 = sbr.rel (%p421) target = $region52
      $region51: #{tpu_custom_call.1} parent=5 // pred_region
        %s424 = ssub.s32 %s19, 2
        // Predicated region
        $region53: #{tpu_custom_call.1} parent=51 // pred_check
          %p425 = pneg %p152
        $region54: #{tpu_custom_call.1} parent=51 // pred_check_branch
          %427 = sbr.rel (%p425) target = $region56
        $region55: #{tpu_custom_call.1} parent=51 // pred_region
          %s428 = sand.u32 %s137, 1
          %s429 = scalar_lea.sflag [#allocation4], %s428
          %s430 = sand.u32 %s137, 1
          %s431 = scalar_lea.vmem [#allocation7], %s430
          %432 = dma.done %s429, 16
        $region56: #{tpu_custom_call.1} parent=51 // pred_fallthru
          _
      $region52: #{tpu_custom_call.1} parent=5 // pred_fallthru
        _
    $region6: #{tpu_custom_call.1} parent=1 // loop_footer
      %s23 = sadd.s32 1, %s19
    $region7: #{tpu_custom_call.1} parent=1 // loop_footer_branch
      %18 = sbr.rel target = $region3
    $region8: #{tpu_custom_call.1} parent=1 // loop_exit
      _
    %433 = vsyncpa [#allocation3], 1
    %s434 = scalar_lea.sflag [#allocation3], 1
    %435 = vsyncpa %s434, 1
    %436 = vsyncpa [#allocation6], 1
    %s437 = scalar_lea.sflag [#allocation6], 1
    %438 = vsyncpa %s437, 1
    %439 = vsyncpa [#allocation4], 1
    %s440 = scalar_lea.sflag [#allocation4], 1
    %441 = vsyncpa %s440, 1

</llo_original>
